<compile_context>
chip_gen: v5e
topology: v5e:2x2
jax: 0.10.0
libtpu: 0.0.40
codegen_flags: <defaults>
</compile_context>

<pallas_src>
import functools

import jax
import jax.numpy as jnp
from jax.experimental import pallas as pl
from jax.experimental.pallas import tpu as pltpu

# Fixed architecture from the PyTorch module.
H1 = 128                   # fc1 width (already lane-aligned)
H2 = 64                    # fc2 width
S_PAD = 64                 # rows reserved for W1 inside the packed slab (>= state_size)

# Row offsets of each weight matrix inside the packed bf16 weight slab (128 lanes wide).
W1_OFF = 0                 # (S_PAD, 128): only the first state_size rows are used
W2_OFF = W1_OFF + S_PAD    # (128, 128):  only the first H2 columns are used
W3_OFF = W2_OFF + H1       # (128, 128):  only the first H2 rows / action_size cols are used
W_ROWS = W3_OFF + 128      # 320 rows total (~80 KiB bf16)


def qnetwork_kernel(x_ref, w_ref, b_ref, o_ref):
    """One batch tile: o = relu(relu(relu(x@W1+b1)@W2+b2)@W3+b3)[:, :action_size]."""
    s = x_ref.shape[-1]          # true state_size (ragged contraction dim)
    n_out = o_ref.shape[-1]      # true action_size

    x = x_ref[...].astype(jnp.bfloat16)                  # (TB, S)

    w1 = w_ref[W1_OFF:W1_OFF + s, :]                     # (S, 128)   bf16
    w2 = w_ref[W2_OFF:W2_OFF + H1, :H2]                  # (128, 64)  bf16
    w3 = w_ref[W3_OFF:W3_OFF + H2, :]                    # (64, 128)  bf16
    b1 = b_ref[0:1, :]                                   # (1, 128)   f32
    b2 = b_ref[1:2, :H2]                                 # (1, 64)    f32
    b3 = b_ref[2:3, :]                                   # (1, 128)   f32

    # bf16 MXU inputs, f32 accumulation; bias add + ReLU stay in f32 (v5e-safe).
    h1 = jnp.maximum(
        jnp.dot(x, w1, preferred_element_type=jnp.float32) + b1, 0.0)
    h2 = jnp.maximum(
        jnp.dot(h1.astype(jnp.bfloat16), w2, preferred_element_type=jnp.float32) + b2, 0.0)
    out = jnp.maximum(
        jnp.dot(h2.astype(jnp.bfloat16), w3, preferred_element_type=jnp.float32) + b3, 0.0)

    # Narrow (lane-masked) store of only the real action columns; the HBM-side
    # destination block stays contiguous, so the writeback DMA is efficient.
    o_ref[...] = out[:, :n_out].astype(o_ref.dtype)


def _round_up(x, m):
    return ((x + m - 1) // m) * m


def _batch_tile(batch, block_b):
    """Large tile (amortize ~0.35us/step overhead), but keep >= 2 grid steps for
    non-tiny batches so the 'parallel' axis shards across both v7x TensorCores."""
    if batch < 16:
        return batch                       # one block == whole batch (legal: equals array dim)
    n_steps = max(pl.cdiv(batch, block_b), 2)
    return _round_up(pl.cdiv(batch, n_steps), 8)


@functools.partial(jax.jit, static_argnames=("action_size", "block_b"))
def qnetwork_forward(x, weight_slab, bias_slab, *, action_size, block_b=2048):
    """x: (B, state_size) float32 (bf16 also accepted). Returns (B, action_size) float32."""
    B, S = x.shape
    assert S <= S_PAD

    TB = _batch_tile(B, block_b)
    grid = (pl.cdiv(B, TB),)     # partial last block allowed: OOB rows are dropped

    return pl.pallas_call(
        qnetwork_kernel,
        out_shape=jax.ShapeDtypeStruct((B, action_size), jnp.float32),
        grid=grid,
        in_specs=[
            pl.BlockSpec((TB, S), lambda i: (i, 0)),          # x: tiled over batch, un-padded
            pl.BlockSpec((W_ROWS, 128), lambda i: (0, 0)),    # weight slab: VMEM-resident
            pl.BlockSpec((8, 128), lambda i: (0, 0)),         # bias slab: VMEM-resident
        ],
        out_specs=pl.BlockSpec((TB, action_size), lambda i: (i, 0)),
        compiler_params=pltpu.CompilerParams(
            dimension_semantics=("parallel",)),               # megacore sharding on v7x
    )(x, weight_slab, bias_slab)


def init_params(key, state_size, action_size):
    """PyTorch nn.Linear default init: U(-1/sqrt(fan_in), +1/sqrt(fan_in))."""
    dims = [(state_size, H1), (H1, H2), (H2, action_size)]
    params = {}
    for i, (fan_in, fan_out) in enumerate(dims, start=1):
        key, kw, kb = jax.random.split(key, 3)
        bound = 1.0 / float(fan_in) ** 0.5
        params[f"w{i}"] = jax.random.uniform(
            kw, (fan_in, fan_out), jnp.float32, -bound, bound)
        params[f"b{i}"] = jax.random.uniform(
            kb, (fan_out,), jnp.float32, -bound, bound)
    return params


def pack_params(params, state_size, action_size):
    """Pack the six parameter arrays into one bf16 weight slab + one f32 bias slab.

    Zero padding is placed so the padded rows/columns either contribute exactly
    zero or are sliced away inside the kernel; the math is identical to the
    unpadded network (up to the bf16 weight cast).
    """
    w1 = jnp.zeros((S_PAD, 128), jnp.float32).at[:state_size, :].set(params["w1"])
    w2 = jnp.zeros((H1, 128), jnp.float32).at[:, :H2].set(params["w2"])
    w3 = jnp.zeros((128, 128), jnp.float32).at[:H2, :action_size].set(params["w3"])
    weight_slab = jnp.concatenate([w1, w2, w3], axis=0).astype(jnp.bfloat16)

    bias_slab = jnp.zeros((8, 128), jnp.float32)
    bias_slab = bias_slab.at[0, :H1].set(params["b1"])
    bias_slab = bias_slab.at[1, :H2].set(params["b2"])
    bias_slab = bias_slab.at[2, :action_size].set(params["b3"])
    return weight_slab, bias_slab


def qnetwork_reference(x, params):
    """Pure-JAX reference using the same bf16-weight / f32-accumulate math."""
    def layer(h, w, b):
        y = jnp.dot(h.astype(jnp.bfloat16), w.astype(jnp.bfloat16),
                    preferred_element_type=jnp.float32) + b
        return jnp.maximum(y, 0.0)

    h1 = layer(x, params["w1"], params["b1"])
    h2 = layer(h1, params["w2"], params["b2"])
    # NOTE: the final ReLU matches the PyTorch module exactly as written
    # (F.relu on the output layer, clamping Q-values to be non-negative).
    return layer(h2, params["w3"], params["b3"])


if __name__ == "__main__":
    state_size = 37   # e.g. Banana-navigation state dim
    action_size = 4
    batch = 8

    key = jax.random.PRNGKey(0)
    key, kx = jax.random.split(key)
    params = init_params(key, state_size, action_size)
    weight_slab, bias_slab = pack_params(params, state_size, action_size)

    # Small batch: single grid step.
    x = jax.random.normal(kx, (batch, state_size), jnp.float32)
    out = jax.block_until_ready(
        qnetwork_forward(x, weight_slab, bias_slab, action_size=action_size))
    ref = qnetwork_reference(x, params)
    assert out.shape == (batch, action_size)
    assert jnp.allclose(out, ref, atol=1e-3, rtol=1e-3), "mismatch (small batch)"

    # Larger ragged batch: multiple grid steps plus a partial (OOB-clamped) last block.
    key, kx2 = jax.random.split(key)
    x2 = jax.random.normal(kx2, (300, state_size), jnp.float32)
    out2 = jax.block_until_ready(
        qnetwork_forward(x2, weight_slab, bias_slab,
                         action_size=action_size, block_b=128))
    ref2 = qnetwork_reference(x2, params)
    assert out2.shape == (300, action_size)
    assert jnp.allclose(out2, ref2, atol=1e-3, rtol=1e-3), "mismatch (tiled batch)"

    print("KERNEL_OK")
</pallas_src>

<mosaic_0001>
module attributes {stable_mosaic.version = 11 : i64} {
  func.func @qnetwork_kernel(%arg0: i32, %arg1: memref<8x37xf32, #tpu.memory_space<vmem>>, %arg2: memref<320x128xbf16, #tpu.memory_space<vmem>>, %arg3: memref<8x128xf32, #tpu.memory_space<vmem>>, %arg4: memref<8x4xf32, #tpu.memory_space<vmem>>) attributes {dimension_semantics = [#tpu.dimension_semantics<parallel>], iteration_bounds = array<i64: 1>, scalar_prefetch = 0 : i64, scratch_operands = 0 : i64, tpu.core_type = #tpu.core_type<tc>, window_params = [{transform_indices = @transform_0, window_bounds = array<i64: 8, 37>}, {pipeline_mode = #tpu.pipeline_mode<synchronous>, transform_indices = @transform_1, window_bounds = array<i64: 320, 128>}, {pipeline_mode = #tpu.pipeline_mode<synchronous>, transform_indices = @transform_2, window_bounds = array<i64: 8, 128>}, {transform_indices = @transform_3, window_bounds = array<i64: 8, 4>}]} {
    %c0 = arith.constant 0 : index
    %c0_0 = arith.constant 0 : index
    %0 = vector.load %arg1[%c0, %c0_0] : memref<8x37xf32, #tpu.memory_space<vmem>>, vector<8x37xf32>
    %1 = arith.truncf %0 : vector<8x37xf32> to vector<8x37xbf16>
    %c0_1 = arith.constant 0 : index
    %c0_2 = arith.constant 0 : index
    %2 = vector.load %arg2[%c0_1, %c0_2] : memref<320x128xbf16, #tpu.memory_space<vmem>>, vector<37x128xbf16>
    %c64 = arith.constant 64 : index
    %c0_3 = arith.constant 0 : index
    %3 = vector.load %arg2[%c64, %c0_3] : memref<320x128xbf16, #tpu.memory_space<vmem>>, vector<128x64xbf16>
    %c192 = arith.constant 192 : index
    %c0_4 = arith.constant 0 : index
    %4 = vector.load %arg2[%c192, %c0_4] : memref<320x128xbf16, #tpu.memory_space<vmem>>, vector<64x128xbf16>
    %c0_5 = arith.constant 0 : index
    %c0_6 = arith.constant 0 : index
    %5 = vector.load %arg3[%c0_5, %c0_6] : memref<8x128xf32, #tpu.memory_space<vmem>>, vector<1x128xf32>
    %c1 = arith.constant 1 : index
    %c0_7 = arith.constant 0 : index
    %6 = vector.load %arg3[%c1, %c0_7] : memref<8x128xf32, #tpu.memory_space<vmem>>, vector<1x64xf32>
    %c2 = arith.constant 2 : index
    %c0_8 = arith.constant 0 : index
    %7 = vector.load %arg3[%c2, %c0_8] : memref<8x128xf32, #tpu.memory_space<vmem>>, vector<1x128xf32>
    %cst = arith.constant dense<0.000000e+00> : vector<8x128xf32>
    %8 = tpu.matmul %1, %2, %cst {dimension_numbers = #tpu.dot_dimension_numbers<[1], [0], [0], [1], [0, 0, 1, 1], [], []>} : vector<8x37xbf16>, vector<37x128xbf16>, vector<8x128xf32> -> vector<8x128xf32>
    %9 = vector.broadcast %5 : vector<1x128xf32> to vector<8x128xf32>
    %10 = arith.addf %8, %9 : vector<8x128xf32>
    %cst_9 = arith.constant 0.000000e+00 : f32
    %11 = vector.broadcast %cst_9 : f32 to vector<8x128xf32>
    %12 = arith.maximumf %10, %11 : vector<8x128xf32>
    %13 = arith.truncf %12 : vector<8x128xf32> to vector<8x128xbf16>
    %cst_10 = arith.constant dense<0.000000e+00> : vector<8x64xf32>
    %14 = tpu.matmul %13, %3, %cst_10 {dimension_numbers = #tpu.dot_dimension_numbers<[1], [0], [0], [1], [0, 0, 1, 1], [], []>} : vector<8x128xbf16>, vector<128x64xbf16>, vector<8x64xf32> -> vector<8x64xf32>
    %15 = vector.broadcast %6 : vector<1x64xf32> to vector<8x64xf32>
    %16 = arith.addf %14, %15 : vector<8x64xf32>
    %cst_11 = arith.constant 0.000000e+00 : f32
    %17 = vector.broadcast %cst_11 : f32 to vector<8x64xf32>
    %18 = arith.maximumf %16, %17 : vector<8x64xf32>
    %19 = arith.truncf %18 : vector<8x64xf32> to vector<8x64xbf16>
    %cst_12 = arith.constant dense<0.000000e+00> : vector<8x128xf32>
    %20 = tpu.matmul %19, %4, %cst_12 {dimension_numbers = #tpu.dot_dimension_numbers<[1], [0], [0], [1], [0, 0, 1, 1], [], []>} : vector<8x64xbf16>, vector<64x128xbf16>, vector<8x128xf32> -> vector<8x128xf32>
    %21 = vector.broadcast %7 : vector<1x128xf32> to vector<8x128xf32>
    %22 = arith.addf %20, %21 : vector<8x128xf32>
    %cst_13 = arith.constant 0.000000e+00 : f32
    %23 = vector.broadcast %cst_13 : f32 to vector<8x128xf32>
    %24 = arith.maximumf %22, %23 : vector<8x128xf32>
    %25 = vector.extract_strided_slice %24 {offsets = [0, 0], sizes = [8, 4], strides = [1, 1]} : vector<8x128xf32> to vector<8x4xf32>
    %c0_14 = arith.constant 0 : index
    %c0_15 = arith.constant 0 : index
    %26 = vector.load %arg4[%c0_14, %c0_15] : memref<8x4xf32, #tpu.memory_space<vmem>>, vector<8x4xf32>
    tpu.vector_store %arg4[%c0_14, %c0_15], %25 {strides = array<i32>} : memref<8x4xf32, #tpu.memory_space<vmem>>, vector<8x4xf32>,
    return
  }
  func.func @transform_0(%arg0: i32) -> (i32, i32) {
    %c0_i32 = arith.constant 0 : i32
    %c0_i32_0 = arith.constant 0 : i32
    return %arg0, %c0_i32 : i32, i32
  }
  func.func @transform_1(%arg0: i32) -> (i32, i32) {
    %c0_i32 = arith.constant 0 : i32
    %c0_i32_0 = arith.constant 0 : i32
    %c0_i32_1 = arith.constant 0 : i32
    return %c0_i32, %c0_i32_0 : i32, i32
  }
  func.func @transform_2(%arg0: i32) -> (i32, i32) {
    %c0_i32 = arith.constant 0 : i32
    %c0_i32_0 = arith.constant 0 : i32
    %c0_i32_1 = arith.constant 0 : i32
    return %c0_i32, %c0_i32_0 : i32, i32
  }
  func.func @transform_3(%arg0: i32) -> (i32, i32) {
    %c0_i32 = arith.constant 0 : i32
    %c0_i32_0 = arith.constant 0 : i32
    return %arg0, %c0_i32 : i32, i32
  }
}

</mosaic_0001>

<llo_original>
// kernel: qnetwork_forward.1
$region0: #{qnetwork_forward.1}
  #allocation0 [shape = 'u32[]', space=smem, size = 0x4, offset = 0x4, fixed_abs, tag = 'smem constant byte address 0x4 - core index']
  #allocation1 [shape = 'u32[72,128]{1,0:T(1,128)}', space=vmem, size = 0x9000, scoped, tag = 'internal scratch']
  %s0 = inlined_call_operand.hbm [shape: f32[8,37], index: 0, kind: input, shape index: {}]
  %s1 = inlined_call_operand.hbm [shape: bf16[320,128], index: 1, kind: input, shape index: {}]
  %s2 = inlined_call_operand.hbm [shape: f32[8,128], index: 2, kind: input, shape index: {}]
  %s3 = inlined_call_operand.vmem [shape: f32[8,4], index: 3, kind: output, shape index: {}]
  %s4 = sld [smem:[#allocation0]]
  $region34: #{qnetwork_forward.1} parent=0
    _
  %s6 = ssub.s32 1, %s4
  %s7 = scalar_select 0, %s6, %s4
  $region1: #{qnetwork_forward.1} parent=0
    #allocation2 [shape = 'u8[4096]{0}', space=vmem, size = 0x1000, scoped, tag = 'input window, operand 0, single buffered']
    #allocation3 [shape = 's32[1]{0}', space=sflag, size = 0x4, scoped, tag = 'scoped memory for qnetwork_forward.1']
    #allocation4 [shape = 'u8[81920]{0}', space=vmem, size = 0x14000, scoped, tag = 'input window, operand 1, single buffered']
    #allocation5 [shape = 's32[1]{0}', space=sflag, size = 0x4, scoped, tag = 'scoped memory for qnetwork_forward.1']
    #allocation6 [shape = 'u8[4096]{0}', space=vmem, size = 0x1000, scoped, tag = 'input window, operand 2, single buffered']
    %8 = vsyncpa [#allocation3], 0
    %9 = vsyncpa [#allocation5], 0
    // Predicated region
    $region2: #{qnetwork_forward.1} parent=1 // pred_check
      _
    $region3: #{qnetwork_forward.1} parent=1 // pred_check_branch
      %11 = sbr.rel (0) target = $region5
    $region4: #{qnetwork_forward.1} parent=1 // pred_region
      %13 = vsyncadd [#allocation3], 0
      %s15 = sshll.u32 %s0, 4
      %s16 = int_to_ptr.hbm [resolvable:$true] %s15
      %s17 = sshll.u32 [#allocation2], 4
      %s18 = int_to_ptr.vmem [resolvable:$true] %s17
      %20 = dma.hbm_to_vmem [thread:$0]  %s16, 128, %s18, [#allocation3]
    $region5: #{qnetwork_forward.1} parent=1 // pred_fallthru
      _
    // Predicated region
    $region6: #{qnetwork_forward.1} parent=1 // pred_check
      _
    $region7: #{qnetwork_forward.1} parent=1 // pred_check_branch
      %22 = sbr.rel (0) target = $region9
    $region8: #{qnetwork_forward.1} parent=1 // pred_region
      %24 = vsyncadd [#allocation5], 0
      %s25 = sshll.u32 %s1, 4
      %s26 = int_to_ptr.hbm [resolvable:$true] %s25
      %s27 = sshll.u32 [#allocation4], 4
      %s28 = int_to_ptr.vmem [resolvable:$true] %s27
      %33 = dma.hbm_to_vmem [thread:$0]  %s26, 2560, %s28, [#allocation5], 64, 64, 4
    $region9: #{qnetwork_forward.1} parent=1 // pred_fallthru
      _
    // Predicated region
    $region10: #{qnetwork_forward.1} parent=1 // pred_check
      _
    $region11: #{qnetwork_forward.1} parent=1 // pred_check_branch
      %35 = sbr.rel (0) target = $region13
    $region12: #{qnetwork_forward.1} parent=1 // pred_region
      %37 = vsyncadd [#allocation5], 0
      %s39 = sshll.u32 %s2, 4
      %s40 = int_to_ptr.hbm [resolvable:$true] %s39
      %s41 = sshll.u32 [#allocation6], 4
      %s42 = int_to_ptr.vmem [resolvable:$true] %s41
      %44 = dma.hbm_to_vmem [thread:$0]  %s40, 128, %s42, [#allocation5]
    $region13: #{qnetwork_forward.1} parent=1 // pred_fallthru
      _
    // Predicated region
    $region14: #{qnetwork_forward.1} parent=1 // pred_check
      _
    $region15: #{qnetwork_forward.1} parent=1 // pred_check_branch
      %46 = sbr.rel (0) target = $region17
    $region16: #{qnetwork_forward.1} parent=1 // pred_region
      %48 = dma.done [#allocation3], 128
    $region17: #{qnetwork_forward.1} parent=1 // pred_fallthru
      _
    // Predicated region
    $region18: #{qnetwork_forward.1} parent=1 // pred_check
      _
    $region19: #{qnetwork_forward.1} parent=1 // pred_check_branch
      %50 = sbr.rel (0) target = $region21
    $region20: #{qnetwork_forward.1} parent=1 // pred_region
      %52 = dma.done [#allocation5], 2560
    $region21: #{qnetwork_forward.1} parent=1 // pred_fallthru
      _
    // Predicated region
    $region22: #{qnetwork_forward.1} parent=1 // pred_check
      _
    $region23: #{qnetwork_forward.1} parent=1 // pred_check_branch
      %54 = sbr.rel (0) target = $region25
    $region24: #{qnetwork_forward.1} parent=1 // pred_region
      %56 = dma.done [#allocation5], 128
    $region25: #{qnetwork_forward.1} parent=1 // pred_fallthru
      _
    %v58 = vld [vmem:[#allocation2] sm:$0xff]
    %v59 = vpack.c.bf16 %v58, %v58
    %v60 = vld [vmem:[#allocation4] sm:$0xf]
    %v61 = vld [vmem:[#allocation4 + $0x4] sm:$0xf]
    %v62 = vld [vmem:[#allocation4 + $0x8] sm:$0xf]
    %v63 = vld [vmem:[#allocation4 + $0xc] sm:$0xf]
    %v64 = vld [vmem:[#allocation4 + $0x10] sm:$0x7]
    %v65 = vld [vmem:[#allocation4 + $0x20] sm:$0xf]
    %v66 = vld [vmem:[#allocation4 + $0x24] sm:$0xf]
    %v67 = vld [vmem:[#allocation4 + $0x28] sm:$0xf]
    %v68 = vld [vmem:[#allocation4 + $0x2c] sm:$0xf]
    %v69 = vld [vmem:[#allocation4 + $0x30] sm:$0xf]
    %v70 = vld [vmem:[#allocation4 + $0x34] sm:$0xf]
    %v71 = vld [vmem:[#allocation4 + $0x38] sm:$0xf]
    %v72 = vld [vmem:[#allocation4 + $0x3c] sm:$0xf]
    %v73 = vld [vmem:[#allocation4 + $0x40] sm:$0xf]
    %v74 = vld [vmem:[#allocation4 + $0x44] sm:$0xf]
    %v75 = vld [vmem:[#allocation4 + $0x48] sm:$0xf]
    %v76 = vld [vmem:[#allocation4 + $0x4c] sm:$0xf]
    %v77 = vld [vmem:[#allocation4 + $0x50] sm:$0xf]
    %v78 = vld [vmem:[#allocation4 + $0x54] sm:$0xf]
    %v79 = vld [vmem:[#allocation4 + $0x58] sm:$0xf]
    %v80 = vld [vmem:[#allocation4 + $0x5c] sm:$0xf]
    %v81 = vld [vmem:[#allocation4 + $0x60] sm:$0xf]
    %v82 = vld [vmem:[#allocation4 + $0x64] sm:$0xf]
    %v83 = vld [vmem:[#allocation4 + $0x68] sm:$0xf]
    %v84 = vld [vmem:[#allocation4 + $0x6c] sm:$0xf]
    %v85 = vld [vmem:[#allocation4 + $0x70] sm:$0xf]
    %v86 = vld [vmem:[#allocation4 + $0x74] sm:$0xf]
    %v87 = vld [vmem:[#allocation4 + $0x78] sm:$0xf]
    %v88 = vld [vmem:[#allocation4 + $0x7c] sm:$0xf]
    %v89 = vld [vmem:[#allocation6] sm:$0x1]
    %v90 = vld [vmem:[#allocation6 + $0x1] sm:$0x1]
    %v91 = vld [vmem:[#allocation6 + $0x2] sm:$0x1]
    %v92 = vperm.slane %v89, 0
    %v98 = vunpack.c.l.b16 %v60
    %v99 = vunpack.c.l.b16 %v61
    %v100 = vunpack.c.l.b16 %v62
    %v101 = vunpack.c.l.b16 %v63
    %v102 = vunpack.c.l.b16 %v64
    %v103 = vpack.c.b16 %v99, %v98
    %v104 = vpack.c.b16 %v101, %v100
    %v105 = vpack.c.b16 %v102, %v102
    %vm108 = vcmask 302080
    %v110 = vsel %vm108, %v59, 0
    %vm112 = vcmask 1041408
    %vm113 = vcmask 1042432
    %v114 = vsel %vm112, 4294967295, 65535
    %v115 = vsel %vm113, %v114, 0
    %v117 = vand.u32 %v105, %v115
    %119 = vmatpush.bf16.msra.mxu0 0
    %120 = vmatpush.bf16.msra.mxu0 0
    %121 = vmatpush.bf16.msra.mxu0 0
    %122 = vmatpush.bf16.msra.mxu0 0
    %123 = vmatpush.bf16.msra.mxu0 0
    %124 = vmatpush.bf16.msra.mxu0 %v117
    %125 = vmatpush.bf16.msra.mxu0 %v104
    %126 = vmatpush.bf16.msra.mxu0 %v103
    %127 = vmatmul.bf16.gmra.mxu0 %v110
    %v128 = vpop.f32.mrf.mxu0
    %v129 = vadd.f32 %v92, %v128
    %v130 = vpop.f32.mrf.mxu0
    %131 = vdwg.mxu0
    %v132 = vmax.f32 %v129, 0.0
    %v133 = vpack.c.bf16 %v132, %v132
    %v134 = vperm.slane %v90, 0
    %v151 = vunpack.c.l.b16 %v65
    %v152 = vunpack.c.l.b16 %v66
    %v153 = vunpack.c.l.b16 %v67
    %v154 = vunpack.c.l.b16 %v68
    %v155 = vunpack.c.l.b16 %v69
    %v156 = vunpack.c.l.b16 %v70
    %v157 = vunpack.c.l.b16 %v71
    %v158 = vunpack.c.l.b16 %v72
    %v159 = vunpack.c.l.b16 %v73
    %v160 = vunpack.c.l.b16 %v74
    %v161 = vunpack.c.l.b16 %v75
    %v162 = vunpack.c.l.b16 %v76
    %v163 = vunpack.c.l.b16 %v77
    %v164 = vunpack.c.l.b16 %v78
    %v165 = vunpack.c.l.b16 %v79
    %v166 = vunpack.c.l.b16 %v80
    %v167 = vpack.c.b16 %v152, %v151
    %v168 = vpack.c.b16 %v154, %v153
    %v169 = vpack.c.b16 %v156, %v155
    %v170 = vpack.c.b16 %v158, %v157
    %v171 = vpack.c.b16 %v160, %v159
    %v172 = vpack.c.b16 %v162, %v161
    %v173 = vpack.c.b16 %v164, %v163
    %v174 = vpack.c.b16 %v166, %v165
    %183 = vmatpush.bf16.msra.mxu0 %v174
    %184 = vmatpush.bf16.msra.mxu0 %v173
    %185 = vmatpush.bf16.msra.mxu0 %v172
    %186 = vmatpush.bf16.msra.mxu0 %v171
    %187 = vmatpush.bf16.msra.mxu0 %v170
    %188 = vmatpush.bf16.msra.mxu0 %v169
    %189 = vmatpush.bf16.msra.mxu0 %v168
    %190 = vmatpush.bf16.msra.mxu0 %v167
    %191 = vmatmul.bf16.gmra.mxu0 %v133
    %v192 = vpop.f32.mrf.mxu0
    %v193 = vadd.f32 %v134, %v192
    %v194 = vpop.f32.mrf.mxu0
    %195 = vdwg.mxu0
    %v196 = vmax.f32 %v193, 0.0
    %v197 = vpack.c.bf16 %v196, %v196
    %v198 = vperm.slane %v91, 0
    %v207 = vunpack.c.l.b16 %v81
    %v208 = vunpack.c.l.b16 %v82
    %v209 = vunpack.c.l.b16 %v83
    %v210 = vunpack.c.l.b16 %v84
    %v211 = vunpack.c.l.b16 %v85
    %v212 = vunpack.c.l.b16 %v86
    %v213 = vunpack.c.l.b16 %v87
    %v214 = vunpack.c.l.b16 %v88
    %v215 = vpack.c.b16 %v208, %v207
    %v216 = vpack.c.b16 %v210, %v209
    %v217 = vpack.c.b16 %v212, %v211
    %v218 = vpack.c.b16 %v214, %v213
    %vm223 = vcmask 523264
    %v225 = vsel %vm223, %v197, 0
    %227 = vmatpush.bf16.msra.mxu0 0
    %228 = vmatpush.bf16.msra.mxu0 0
    %229 = vmatpush.bf16.msra.mxu0 0
    %230 = vmatpush.bf16.msra.mxu0 0
    %231 = vmatpush.bf16.msra.mxu0 %v218
    %232 = vmatpush.bf16.msra.mxu0 %v217
    %233 = vmatpush.bf16.msra.mxu0 %v216
    %234 = vmatpush.bf16.msra.mxu0 %v215
    %235 = vmatmul.bf16.gmra.mxu0 %v225
    %v236 = vpop.f32.mrf.mxu0
    %v237 = vadd.f32 %v198, %v236
    %v238 = vpop.f32.mrf.mxu0
    %239 = vdwg.mxu0
    %v240 = vmax.f32 %v237, 0.0
    %vm241 = vcmask 31744
    %242 = vst.msk [vmem:[%s3] sm:$0xff] %vm241, %v240
    // Predicated region
    $region26: #{qnetwork_forward.1} parent=1 // pred_check
      _
    $region27: #{qnetwork_forward.1} parent=1 // pred_check_branch
      %244 = sbr.rel (0) target = $region29
    $region28: #{qnetwork_forward.1} parent=1 // pred_region
      _
    $region29: #{qnetwork_forward.1} parent=1 // pred_fallthru
      _
    // Predicated region
    $region30: #{qnetwork_forward.1} parent=1 // pred_check
      _
    $region31: #{qnetwork_forward.1} parent=1 // pred_check_branch
      %246 = sbr.rel (0) target = $region33
    $region32: #{qnetwork_forward.1} parent=1 // pred_region
      _
    $region33: #{qnetwork_forward.1} parent=1 // pred_fallthru
      _
    %247 = vsyncpa [#allocation3], 1
    %248 = vsyncpa [#allocation5], 1

</llo_original>
